<compile_context>
chip_gen: v5e
topology: v5e:2x2
jax: 0.10.0
libtpu: 0.0.40
codegen_flags: <defaults>
</compile_context>

<pallas_src>
import jax
import jax.numpy as jnp
from jax.experimental import pallas as pl
from jax.experimental.pallas import tpu as pltpu

_LANE = 128       # vreg lane width
_SUBLANE = 8      # vreg sublane count (f32)
_NEG_BIG = -1e30  # bias for padded action columns -> softmax weight exactly 0


def _round_up(n, m):
    return ((n + m - 1) // m) * m


def _propensity_mlp_kernel(x_ref, w1_ref, b1_ref, w2_ref, b2_ref, out_ref):
    # ---- hidden layer: x @ W1 + b1, ReLU (MXU bf16 operands, f32 accumulate) ----
    h = jnp.dot(x_ref[...], w1_ref[...], preferred_element_type=jnp.float32)
    h = jnp.maximum(h + b1_ref[...], 0.0)          # b1 (f32) broadcast over rows

    # ---- output layer: h @ W2 + b2 (cast h to the MXU operand dtype) ----
    logits = jnp.dot(h.astype(w2_ref.dtype), w2_ref[...],
                     preferred_element_type=jnp.float32)
    logits = logits + b2_ref[...]                  # padded action cols -> ~-1e30

    # ---- numerically stable softmax over the lane (action) axis ----
    m = jnp.max(logits, axis=-1, keepdims=True)
    e = jnp.exp(logits - m)                        # padded cols underflow to 0
    denom = jnp.sum(e, axis=-1, keepdims=True)
    # EUP approximate reciprocal + one Newton-Raphson refinement (keeps the exact
    # divide off the VALU critical path, ~f32 accurate).
    r = pl.reciprocal(denom, approx=True)
    r = r * (2.0 - denom * r)
    probs = e * r

    # Store either the full lane-dense 128-wide slab or just the real action
    # columns (static slice -> masked vst) depending on the output block width.
    n_out = out_ref.shape[-1]
    out_ref[...] = probs[:, :n_out].astype(out_ref.dtype)


def prepare_propensity_params(w1, b1, w2, b2, *, compute_dtype=jnp.bfloat16):
    """One-time padding/cast of the MLP parameters (hoisted out of the hot path).

    hidden and num_actions are zero-padded to 128 lanes so the ReLU/softmax vregs
    are dense; padded action columns get a -1e30 bias so softmax assigns them
    exactly 0 probability. Call once; reuse the returned dict for every forward.
    """
    in_dim, hidden = w1.shape
    num_actions = w2.shape[1]
    hid_p = _round_up(hidden, _LANE)
    act_p = _round_up(num_actions, _LANE)
    f32 = jnp.float32

    w1p = jnp.zeros((in_dim, hid_p), compute_dtype).at[:, :hidden].set(
        w1.astype(compute_dtype))
    b1p = jnp.zeros((1, hid_p), f32).at[:, :hidden].set(
        jnp.reshape(b1, (1, -1)).astype(f32))
    w2p = jnp.zeros((hid_p, act_p), compute_dtype).at[:hidden, :num_actions].set(
        w2.astype(compute_dtype))
    b2p = jnp.full((1, act_p), _NEG_BIG, f32).at[:, :num_actions].set(
        jnp.reshape(b2, (1, -1)).astype(f32))

    return dict(w1p=w1p, b1p=b1p, w2p=w2p, b2p=b2p,
                in_dim=in_dim, hidden=hidden, num_actions=num_actions,
                hid_p=hid_p, act_p=act_p, compute_dtype=compute_dtype)


def propensity_forward(x, params, *, block_batch=1024, compact_out=None):
    """Fused MLP + softmax propensity forward pass on TPU via Pallas."""
    batch, in_dim = x.shape
    assert in_dim == params["in_dim"], "input feature dim mismatch"
    num_actions = params["num_actions"]
    hid_p = params["hid_p"]
    act_p = params["act_p"]
    cdt = params["compute_dtype"]

    # Batch tiling: single grid step for small batches, big tiles otherwise.
    tb = _round_up(min(block_batch, _round_up(batch, _SUBLANE)), _SUBLANE)
    batch_p = _round_up(batch, tb)
    grid = (batch_p // tb,)

    # Output layout: lane-dense (unmasked vst) for small / latency-bound batches,
    # compact num_actions-wide writeback (16x fewer HBM bytes) for large batches.
    if compact_out is None:
        compact_out = batch_p >= 4096
    out_w = num_actions if compact_out else act_p

    # Cheap cast; pad the batch only when it is not already tile-aligned.
    xp = x.astype(cdt)
    if batch_p != batch:
        xp = jnp.pad(xp, ((0, batch_p - batch), (0, 0)))

    x_bytes = jnp.dtype(cdt).itemsize
    w_bytes = ((params["w1p"].size + params["w2p"].size) * x_bytes
               + (params["b1p"].size + params["b2p"].size) * 4)

    cost = pl.CostEstimate(
        flops=2 * batch_p * (in_dim * hid_p + hid_p * act_p),
        transcendentals=batch_p * act_p,
        bytes_accessed=(batch_p * in_dim * x_bytes + w_bytes
                        + batch_p * out_w * 4),
    )

    # Tight VMEM budget: double-buffered x/out tiles + resident weights + f32
    # intermediates, with 2x headroom; clamp to [8 MiB, 32 MiB] to stay safe on
    # every generation while leaving headroom on v7x (64 MiB physical).
    vmem_bytes = (2 * tb * in_dim * x_bytes + 2 * tb * out_w * 4
                  + 2 * w_bytes + 4 * tb * act_p * 4)
    vmem_limit = int(min(max(2 * vmem_bytes, 8 << 20), 32 << 20))

    out_p = pl.pallas_call(
        _propensity_mlp_kernel,
        out_shape=jax.ShapeDtypeStruct((batch_p, out_w), jnp.float32),
        grid_spec=pltpu.PrefetchScalarGridSpec(
            num_scalar_prefetch=0,
            grid=grid,
            in_specs=[
                # x: tiled over the batch grid axis (auto double-buffered DMA)
                pl.BlockSpec((tb, in_dim), lambda i: (i, 0)),
                # weights/biases: constant index_map -> VMEM-resident, no re-DMA
                pl.BlockSpec((in_dim, hid_p), lambda i: (0, 0)),
                pl.BlockSpec((1, hid_p), lambda i: (0, 0)),
                pl.BlockSpec((hid_p, act_p), lambda i: (0, 0)),
                pl.BlockSpec((1, act_p), lambda i: (0, 0)),
            ],
            out_specs=pl.BlockSpec((tb, out_w), lambda i: (i, 0)),
        ),
        compiler_params=pltpu.CompilerParams(
            # independent batch tiles -> megacore sharding on v7x, free elsewhere
            dimension_semantics=("parallel",),
            vmem_limit_bytes=vmem_limit,
        ),
        cost_estimate=cost,
    )(xp, params["w1p"], params["b1p"], params["w2p"], params["b2p"])

    # strip batch padding and (if lane-dense) the zero-probability padded columns
    return out_p[:batch, :num_actions]


def reference_forward(x, w1, b1, w2, b2):
    hp = jax.lax.Precision.HIGHEST
    h = jnp.maximum(jnp.dot(x, w1, precision=hp) + b1, 0.0)
    logits = jnp.dot(h, w2, precision=hp) + b2
    return jax.nn.softmax(logits, axis=-1)


if __name__ == "__main__":
    # Small, module-consistent shapes: 256 states of dim 32, hidden=64, 8 actions.
    batch, in_dim, hidden, num_actions = 256, 32, 64, 8

    key = jax.random.PRNGKey(0)
    kx, kw1, kb1, kw2, kb2 = jax.random.split(key, 5)

    x = jax.random.normal(kx, (batch, in_dim), dtype=jnp.float32)
    w1 = jax.random.normal(kw1, (in_dim, hidden), dtype=jnp.float32) / jnp.sqrt(in_dim)
    b1 = jax.random.normal(kb1, (1, hidden), dtype=jnp.float32) * 0.01
    w2 = jax.random.normal(kw2, (hidden, num_actions), dtype=jnp.float32) / jnp.sqrt(hidden)
    b2 = jax.random.normal(kb2, (1, num_actions), dtype=jnp.float32) * 0.01

    # One-time parameter preparation (padding + bf16 cast), outside the hot path.
    params = prepare_propensity_params(w1, b1, w2, b2)

    # Default path: single grid step, lane-dense output store.
    probs = jax.block_until_ready(propensity_forward(x, params))
    # Compact-output path (used automatically for large batches).
    probs_compact = jax.block_until_ready(
        propensity_forward(x, params, compact_out=True))
    # Multi-step tiled path (exercises the pipelined grid).
    probs_tiled = jax.block_until_ready(
        propensity_forward(x, params, block_batch=128))

    ref = reference_forward(x, w1, b1, w2, b2)
    assert probs.shape == (batch, num_actions)
    # rows must be valid distributions (reciprocal is NR-refined -> tight)
    assert bool(jnp.all(jnp.abs(jnp.sum(probs, axis=-1) - 1.0) < 1e-4))
    # tolerance covers bf16 MXU operands vs the f32 HIGHEST-precision reference
    assert bool(jnp.allclose(probs, ref, atol=3e-2, rtol=3e-2))
    # the alternate output-layout / tiling paths compute identical values
    assert bool(jnp.allclose(probs_compact, probs, atol=1e-6, rtol=1e-6))
    assert bool(jnp.allclose(probs_tiled, probs, atol=1e-6, rtol=1e-6))

    print("KERNEL_OK")
</pallas_src>

<mosaic_0001>
module attributes {stable_mosaic.version = 11 : i64} {
  func.func @_propensity_mlp_kernel(%arg0: i32, %arg1: memref<256x32xbf16, #tpu.memory_space<vmem>>, %arg2: memref<32x128xbf16, #tpu.memory_space<vmem>>, %arg3: memref<1x128xf32, #tpu.memory_space<vmem>>, %arg4: memref<128x128xbf16, #tpu.memory_space<vmem>>, %arg5: memref<1x128xf32, #tpu.memory_space<vmem>>, %arg6: memref<256x128xf32, #tpu.memory_space<vmem>>) attributes {dimension_semantics = [#tpu.dimension_semantics<parallel>], iteration_bounds = array<i64: 1>, scalar_prefetch = 0 : i64, scratch_operands = 0 : i64, tpu.core_type = #tpu.core_type<tc>, window_params = [{transform_indices = @transform_0, window_bounds = array<i64: 256, 32>}, {pipeline_mode = #tpu.pipeline_mode<synchronous>, transform_indices = @transform_1, window_bounds = array<i64: 32, 128>}, {pipeline_mode = #tpu.pipeline_mode<synchronous>, transform_indices = @transform_2, window_bounds = array<i64: 1, 128>}, {pipeline_mode = #tpu.pipeline_mode<synchronous>, transform_indices = @transform_3, window_bounds = array<i64: 128, 128>}, {pipeline_mode = #tpu.pipeline_mode<synchronous>, transform_indices = @transform_4, window_bounds = array<i64: 1, 128>}, {transform_indices = @transform_5, window_bounds = array<i64: 256, 128>}]} {
    %c0 = arith.constant 0 : index
    %c0_0 = arith.constant 0 : index
    %0 = vector.load %arg1[%c0, %c0_0] : memref<256x32xbf16, #tpu.memory_space<vmem>>, vector<256x32xbf16>
    %c0_1 = arith.constant 0 : index
    %c0_2 = arith.constant 0 : index
    %1 = vector.load %arg2[%c0_1, %c0_2] : memref<32x128xbf16, #tpu.memory_space<vmem>>, vector<32x128xbf16>
    %cst = arith.constant dense<0.000000e+00> : vector<256x128xf32>
    %2 = tpu.matmul %0, %1, %cst {dimension_numbers = #tpu.dot_dimension_numbers<[1], [0], [0], [1], [0, 0, 1, 1], [], []>} : vector<256x32xbf16>, vector<32x128xbf16>, vector<256x128xf32> -> vector<256x128xf32>
    %c0_3 = arith.constant 0 : index
    %c0_4 = arith.constant 0 : index
    %3 = vector.load %arg3[%c0_3, %c0_4] : memref<1x128xf32, #tpu.memory_space<vmem>>, vector<1x128xf32>
    %4 = vector.broadcast %3 : vector<1x128xf32> to vector<256x128xf32>
    %5 = arith.addf %2, %4 : vector<256x128xf32>
    %cst_5 = arith.constant 0.000000e+00 : f32
    %6 = vector.broadcast %cst_5 : f32 to vector<256x128xf32>
    %7 = arith.maximumf %5, %6 : vector<256x128xf32>
    %8 = arith.truncf %7 : vector<256x128xf32> to vector<256x128xbf16>
    %c0_6 = arith.constant 0 : index
    %c0_7 = arith.constant 0 : index
    %9 = vector.load %arg4[%c0_6, %c0_7] : memref<128x128xbf16, #tpu.memory_space<vmem>>, vector<128x128xbf16>
    %cst_8 = arith.constant dense<0.000000e+00> : vector<256x128xf32>
    %10 = tpu.matmul %8, %9, %cst_8 {dimension_numbers = #tpu.dot_dimension_numbers<[1], [0], [0], [1], [0, 0, 1, 1], [], []>} : vector<256x128xbf16>, vector<128x128xbf16>, vector<256x128xf32> -> vector<256x128xf32>
    %c0_9 = arith.constant 0 : index
    %c0_10 = arith.constant 0 : index
    %11 = vector.load %arg5[%c0_9, %c0_10] : memref<1x128xf32, #tpu.memory_space<vmem>>, vector<1x128xf32>
    %12 = vector.broadcast %11 : vector<1x128xf32> to vector<256x128xf32>
    %13 = arith.addf %10, %12 : vector<256x128xf32>
    %cst_11 = arith.constant dense<0xFF800000> : vector<256xf32>
    %14 = vector.multi_reduction <maximumf>, %13, %cst_11 [1] : vector<256x128xf32> to vector<256xf32>
    %15 = vector.shape_cast %14 : vector<256xf32> to vector<256x1xf32>
    %16 = vector.broadcast %15 : vector<256x1xf32> to vector<256x128xf32>
    %17 = arith.subf %13, %16 : vector<256x128xf32>
    %18 = math.exp %17 : vector<256x128xf32>
    %cst_12 = arith.constant dense<0.000000e+00> : vector<256xf32>
    %19 = vector.multi_reduction <add>, %18, %cst_12 [1] : vector<256x128xf32> to vector<256xf32>
    %20 = vector.shape_cast %19 : vector<256xf32> to vector<256x1xf32>
    %21 = tpu.reciprocal %20 {approx = true} : vector<256x1xf32> -> vector<256x1xf32>
    %22 = arith.mulf %20, %21 : vector<256x1xf32>
    %cst_13 = arith.constant 2.000000e+00 : f32
    %23 = vector.broadcast %cst_13 : f32 to vector<256x1xf32>
    %24 = arith.subf %23, %22 : vector<256x1xf32>
    %25 = arith.mulf %21, %24 : vector<256x1xf32>
    %26 = vector.broadcast %25 : vector<256x1xf32> to vector<256x128xf32>
    %27 = arith.mulf %18, %26 : vector<256x128xf32>
    %c0_14 = arith.constant 0 : index
    %c0_15 = arith.constant 0 : index
    %28 = vector.load %arg6[%c0_14, %c0_15] : memref<256x128xf32, #tpu.memory_space<vmem>>, vector<256x128xf32>
    tpu.vector_store %arg6[%c0_14, %c0_15], %27 {strides = array<i32>} : memref<256x128xf32, #tpu.memory_space<vmem>>, vector<256x128xf32>,
    return
  }
  func.func @transform_0(%arg0: i32) -> (i32, i32) {
    %c0_i32 = arith.constant 0 : i32
    %c0_i32_0 = arith.constant 0 : i32
    return %arg0, %c0_i32 : i32, i32
  }
  func.func @transform_1(%arg0: i32) -> (i32, i32) {
    %c0_i32 = arith.constant 0 : i32
    %c0_i32_0 = arith.constant 0 : i32
    %c0_i32_1 = arith.constant 0 : i32
    return %c0_i32, %c0_i32_0 : i32, i32
  }
  func.func @transform_2(%arg0: i32) -> (i32, i32) {
    %c0_i32 = arith.constant 0 : i32
    %c0_i32_0 = arith.constant 0 : i32
    %c0_i32_1 = arith.constant 0 : i32
    return %c0_i32, %c0_i32_0 : i32, i32
  }
  func.func @transform_3(%arg0: i32) -> (i32, i32) {
    %c0_i32 = arith.constant 0 : i32
    %c0_i32_0 = arith.constant 0 : i32
    %c0_i32_1 = arith.constant 0 : i32
    return %c0_i32, %c0_i32_0 : i32, i32
  }
  func.func @transform_4(%arg0: i32) -> (i32, i32) {
    %c0_i32 = arith.constant 0 : i32
    %c0_i32_0 = arith.constant 0 : i32
    %c0_i32_1 = arith.constant 0 : i32
    return %c0_i32, %c0_i32_0 : i32, i32
  }
  func.func @transform_5(%arg0: i32) -> (i32, i32) {
    %c0_i32 = arith.constant 0 : i32
    %c0_i32_0 = arith.constant 0 : i32
    return %arg0, %c0_i32 : i32, i32
  }
}

</mosaic_0001>

<llo_original>
// kernel: tpu_custom_call.1
$region0: #{tpu_custom_call.1}
  #allocation0 [shape = 'u32[]', space=smem, size = 0x4, offset = 0x4, fixed_abs, tag = 'smem constant byte address 0x4 - core index']
  #allocation1 [shape = 'u32[72,128]{1,0:T(1,128)}', space=vmem, size = 0x9000, scoped, tag = 'internal scratch']
  %s0 = inlined_call_operand.vmem [shape: bf16[256,32], index: 0, kind: input, shape index: {}]
  %s1 = inlined_call_operand.vmem [shape: bf16[32,128], index: 1, kind: input, shape index: {}]
  %s2 = inlined_call_operand.vmem [shape: f32[1,128], index: 2, kind: input, shape index: {}]
  %s3 = inlined_call_operand.vmem [shape: bf16[128,128], index: 3, kind: input, shape index: {}]
  %s4 = inlined_call_operand.vmem [shape: f32[1,128], index: 4, kind: input, shape index: {}]
  %s5 = inlined_call_operand.hbm [shape: f32[256,128], index: 5, kind: output, shape index: {}]
  %s6 = sld [smem:[#allocation0]]
  $region30: #{tpu_custom_call.1} parent=0
    _
  %s8 = ssub.s32 1, %s6
  %s9 = scalar_select 0, %s8, %s6
  $region1: #{tpu_custom_call.1} parent=0
    #allocation2 [shape = 'u8[131072]{0}', space=vmem, size = 0x20000, scoped, tag = 'output window, operand 0, single buffered']
    #allocation3 [shape = 's32[1]{0}', space=sflag, size = 0x4, scoped, tag = 'scoped memory for tpu_custom_call.1']
    %10 = vsyncpa [#allocation3], 0
    // Predicated region
    $region2: #{tpu_custom_call.1} parent=1 // pred_check
      _
    $region3: #{tpu_custom_call.1} parent=1 // pred_check_branch
      %12 = sbr.rel (0) target = $region5
    $region4: #{tpu_custom_call.1} parent=1 // pred_region
      _
    $region5: #{tpu_custom_call.1} parent=1 // pred_fallthru
      _
    // Predicated region
    $region6: #{tpu_custom_call.1} parent=1 // pred_check
      _
    $region7: #{tpu_custom_call.1} parent=1 // pred_check_branch
      %14 = sbr.rel (0) target = $region9
    $region8: #{tpu_custom_call.1} parent=1 // pred_region
      _
    $region9: #{tpu_custom_call.1} parent=1 // pred_fallthru
      _
    // Predicated region
    $region10: #{tpu_custom_call.1} parent=1 // pred_check
      _
    $region11: #{tpu_custom_call.1} parent=1 // pred_check_branch
      %16 = sbr.rel (0) target = $region13
    $region12: #{tpu_custom_call.1} parent=1 // pred_region
      _
    $region13: #{tpu_custom_call.1} parent=1 // pred_fallthru
      _
    // Predicated region
    $region14: #{tpu_custom_call.1} parent=1 // pred_check
      _
    $region15: #{tpu_custom_call.1} parent=1 // pred_check_branch
      %18 = sbr.rel (0) target = $region17
    $region16: #{tpu_custom_call.1} parent=1 // pred_region
      _
    $region17: #{tpu_custom_call.1} parent=1 // pred_fallthru
      _
    // Predicated region
    $region18: #{tpu_custom_call.1} parent=1 // pred_check
      _
    $region19: #{tpu_custom_call.1} parent=1 // pred_check_branch
      %20 = sbr.rel (0) target = $region21
    $region20: #{tpu_custom_call.1} parent=1 // pred_region
      _
    $region21: #{tpu_custom_call.1} parent=1 // pred_fallthru
      _
    %v22 = vld [vmem:[%s0] sm:$0xf]
    %v23 = vld [vmem:[%s0 + $0x4] sm:$0xf]
    %v24 = vld [vmem:[%s0 + $0x8] sm:$0xf]
    %v25 = vld [vmem:[%s0 + $0xc] sm:$0xf]
    %v26 = vld [vmem:[%s0 + $0x10] sm:$0xf]
    %v27 = vld [vmem:[%s0 + $0x14] sm:$0xf]
    %v28 = vld [vmem:[%s0 + $0x18] sm:$0xf]
    %v29 = vld [vmem:[%s0 + $0x1c] sm:$0xf]
    %v30 = vld [vmem:[%s0 + $0x20] sm:$0xf]
    %v31 = vld [vmem:[%s0 + $0x24] sm:$0xf]
    %v32 = vld [vmem:[%s0 + $0x28] sm:$0xf]
    %v33 = vld [vmem:[%s0 + $0x2c] sm:$0xf]
    %v34 = vld [vmem:[%s0 + $0x30] sm:$0xf]
    %v35 = vld [vmem:[%s0 + $0x34] sm:$0xf]
    %v36 = vld [vmem:[%s0 + $0x38] sm:$0xf]
    %v37 = vld [vmem:[%s0 + $0x3c] sm:$0xf]
    %v38 = vld [vmem:[%s0 + $0x40] sm:$0xf]
    %v39 = vld [vmem:[%s0 + $0x44] sm:$0xf]
    %v40 = vld [vmem:[%s0 + $0x48] sm:$0xf]
    %v41 = vld [vmem:[%s0 + $0x4c] sm:$0xf]
    %v42 = vld [vmem:[%s0 + $0x50] sm:$0xf]
    %v43 = vld [vmem:[%s0 + $0x54] sm:$0xf]
    %v44 = vld [vmem:[%s0 + $0x58] sm:$0xf]
    %v45 = vld [vmem:[%s0 + $0x5c] sm:$0xf]
    %v46 = vld [vmem:[%s0 + $0x60] sm:$0xf]
    %v47 = vld [vmem:[%s0 + $0x64] sm:$0xf]
    %v48 = vld [vmem:[%s0 + $0x68] sm:$0xf]
    %v49 = vld [vmem:[%s0 + $0x6c] sm:$0xf]
    %v50 = vld [vmem:[%s0 + $0x70] sm:$0xf]
    %v51 = vld [vmem:[%s0 + $0x74] sm:$0xf]
    %v52 = vld [vmem:[%s0 + $0x78] sm:$0xf]
    %v53 = vld [vmem:[%s0 + $0x7c] sm:$0xf]
    %v54 = vld [vmem:[%s1] sm:$0xf]
    %v55 = vld [vmem:[%s1 + $0x4] sm:$0xf]
    %v56 = vld [vmem:[%s1 + $0x8] sm:$0xf]
    %v57 = vld [vmem:[%s1 + $0xc] sm:$0xf]
    %v58 = vld [vmem:[%s2] sm:$0x1]
    %v60 = vperm.slane %v58, 0
    %v94 = vunpack.c.l.b16 %v22
    %v95 = vunpack.c.l.b16 %v23
    %v96 = vunpack.c.l.b16 %v24
    %v97 = vunpack.c.l.b16 %v25
    %v98 = vunpack.c.l.b16 %v26
    %v99 = vunpack.c.l.b16 %v27
    %v100 = vunpack.c.l.b16 %v28
    %v101 = vunpack.c.l.b16 %v29
    %v102 = vunpack.c.l.b16 %v30
    %v103 = vunpack.c.l.b16 %v31
    %v104 = vunpack.c.l.b16 %v32
    %v105 = vunpack.c.l.b16 %v33
    %v106 = vunpack.c.l.b16 %v34
    %v107 = vunpack.c.l.b16 %v35
    %v108 = vunpack.c.l.b16 %v36
    %v109 = vunpack.c.l.b16 %v37
    %v110 = vunpack.c.l.b16 %v38
    %v111 = vunpack.c.l.b16 %v39
    %v112 = vunpack.c.l.b16 %v40
    %v113 = vunpack.c.l.b16 %v41
    %v114 = vunpack.c.l.b16 %v42
    %v115 = vunpack.c.l.b16 %v43
    %v116 = vunpack.c.l.b16 %v44
    %v117 = vunpack.c.l.b16 %v45
    %v118 = vunpack.c.l.b16 %v46
    %v119 = vunpack.c.l.b16 %v47
    %v120 = vunpack.c.l.b16 %v48
    %v121 = vunpack.c.l.b16 %v49
    %v122 = vunpack.c.l.b16 %v50
    %v123 = vunpack.c.l.b16 %v51
    %v124 = vunpack.c.l.b16 %v52
    %v125 = vunpack.c.l.b16 %v53
    %v126 = vpack.c.b16 %v95, %v94
    %v127 = vpack.c.b16 %v97, %v96
    %v128 = vpack.c.b16 %v99, %v98
    %v129 = vpack.c.b16 %v101, %v100
    %v130 = vpack.c.b16 %v103, %v102
    %v131 = vpack.c.b16 %v105, %v104
    %v132 = vpack.c.b16 %v107, %v106
    %v133 = vpack.c.b16 %v109, %v108
    %v134 = vpack.c.b16 %v111, %v110
    %v135 = vpack.c.b16 %v113, %v112
    %v136 = vpack.c.b16 %v115, %v114
    %v137 = vpack.c.b16 %v117, %v116
    %v138 = vpack.c.b16 %v119, %v118
    %v139 = vpack.c.b16 %v121, %v120
    %v140 = vpack.c.b16 %v123, %v122
    %v141 = vpack.c.b16 %v125, %v124
    %v146 = vunpack.c.l.b16 %v54
    %v147 = vunpack.c.l.b16 %v55
    %v148 = vunpack.c.l.b16 %v56
    %v149 = vunpack.c.l.b16 %v57
    %v150 = vpack.c.b16 %v147, %v146
    %v151 = vpack.c.b16 %v149, %v148
    %vm154 = vcmask 261120
    %v156 = vsel %vm154, %v126, 0
    %v159 = vsel %vm154, %v127, 0
    %v162 = vsel %vm154, %v128, 0
    %v165 = vsel %vm154, %v129, 0
    %v168 = vsel %vm154, %v130, 0
    %v171 = vsel %vm154, %v131, 0
    %v174 = vsel %vm154, %v132, 0
    %v177 = vsel %vm154, %v133, 0
    %v180 = vsel %vm154, %v134, 0
    %v183 = vsel %vm154, %v135, 0
    %v186 = vsel %vm154, %v136, 0
    %v189 = vsel %vm154, %v137, 0
    %v192 = vsel %vm154, %v138, 0
    %v195 = vsel %vm154, %v139, 0
    %v198 = vsel %vm154, %v140, 0
    %v201 = vsel %vm154, %v141, 0
    %203 = vmatpush.bf16.msra.mxu0 0
    %204 = vmatpush.bf16.msra.mxu0 0
    %205 = vmatpush.bf16.msra.mxu0 0
    %206 = vmatpush.bf16.msra.mxu0 0
    %207 = vmatpush.bf16.msra.mxu0 0
    %208 = vmatpush.bf16.msra.mxu0 0
    %209 = vmatpush.bf16.msra.mxu0 %v151
    %210 = vmatpush.bf16.msra.mxu0 %v150
    %211 = vmatmul.bf16.gmra.mxu0 %v156
    %v212 = vpop.f32.mrf.mxu0
    %v213 = vadd.f32 %v60, %v212
    %v214 = vpop.f32.mrf.mxu0
    %v215 = vadd.f32 %v60, %v214
    %216 = vmatmul.bf16.gmra.mxu0 %v159
    %v217 = vpop.f32.mrf.mxu0
    %v218 = vadd.f32 %v60, %v217
    %v219 = vpop.f32.mrf.mxu0
    %v220 = vadd.f32 %v60, %v219
    %221 = vmatmul.bf16.gmra.mxu0 %v162
    %v222 = vpop.f32.mrf.mxu0
    %v223 = vadd.f32 %v60, %v222
    %v224 = vpop.f32.mrf.mxu0
    %v225 = vadd.f32 %v60, %v224
    %226 = vmatmul.bf16.gmra.mxu0 %v165
    %v227 = vpop.f32.mrf.mxu0
    %v228 = vadd.f32 %v60, %v227
    %v229 = vpop.f32.mrf.mxu0
    %v230 = vadd.f32 %v60, %v229
    %231 = vmatmul.bf16.gmra.mxu0 %v168
    %v232 = vpop.f32.mrf.mxu0
    %v233 = vadd.f32 %v60, %v232
    %v234 = vpop.f32.mrf.mxu0
    %v235 = vadd.f32 %v60, %v234
    %236 = vmatmul.bf16.gmra.mxu0 %v171
    %v237 = vpop.f32.mrf.mxu0
    %v238 = vadd.f32 %v60, %v237
    %v239 = vpop.f32.mrf.mxu0
    %v240 = vadd.f32 %v60, %v239
    %241 = vmatmul.bf16.gmra.mxu0 %v174
    %v242 = vpop.f32.mrf.mxu0
    %v243 = vadd.f32 %v60, %v242
    %v244 = vpop.f32.mrf.mxu0
    %v245 = vadd.f32 %v60, %v244
    %246 = vmatmul.bf16.gmra.mxu0 %v177
    %v247 = vpop.f32.mrf.mxu0
    %v248 = vadd.f32 %v60, %v247
    %v249 = vpop.f32.mrf.mxu0
    %v250 = vadd.f32 %v60, %v249
    %251 = vmatmul.bf16.gmra.mxu0 %v180
    %v252 = vpop.f32.mrf.mxu0
    %v253 = vadd.f32 %v60, %v252
    %v254 = vpop.f32.mrf.mxu0
    %v255 = vadd.f32 %v60, %v254
    %256 = vmatmul.bf16.gmra.mxu0 %v183
    %v257 = vpop.f32.mrf.mxu0
    %v258 = vadd.f32 %v60, %v257
    %v259 = vpop.f32.mrf.mxu0
    %v260 = vadd.f32 %v60, %v259
    %261 = vmatmul.bf16.gmra.mxu0 %v186
    %v262 = vpop.f32.mrf.mxu0
    %v263 = vadd.f32 %v60, %v262
    %v264 = vpop.f32.mrf.mxu0
    %v265 = vadd.f32 %v60, %v264
    %266 = vmatmul.bf16.gmra.mxu0 %v189
    %v267 = vpop.f32.mrf.mxu0
    %v268 = vadd.f32 %v60, %v267
    %v269 = vpop.f32.mrf.mxu0
    %v270 = vadd.f32 %v60, %v269
    %271 = vmatmul.bf16.gmra.mxu0 %v192
    %v272 = vpop.f32.mrf.mxu0
    %v273 = vadd.f32 %v60, %v272
    %v274 = vpop.f32.mrf.mxu0
    %v275 = vadd.f32 %v60, %v274
    %276 = vmatmul.bf16.gmra.mxu0 %v195
    %v277 = vpop.f32.mrf.mxu0
    %v278 = vadd.f32 %v60, %v277
    %v279 = vpop.f32.mrf.mxu0
    %v280 = vadd.f32 %v60, %v279
    %281 = vmatmul.bf16.gmra.mxu0 %v198
    %v282 = vpop.f32.mrf.mxu0
    %v283 = vadd.f32 %v60, %v282
    %v284 = vpop.f32.mrf.mxu0
    %v285 = vadd.f32 %v60, %v284
    %286 = vmatmul.bf16.gmra.mxu0 %v201
    %v287 = vpop.f32.mrf.mxu0
    %v288 = vadd.f32 %v60, %v287
    %v289 = vpop.f32.mrf.mxu0
    %v290 = vadd.f32 %v60, %v289
    %291 = vdwg.mxu0
    %v292 = vmax.f32 %v213, 0.0
    %v293 = vmax.f32 %v215, 0.0
    %v294 = vmax.f32 %v218, 0.0
    %v295 = vmax.f32 %v220, 0.0
    %v296 = vmax.f32 %v223, 0.0
    %v297 = vmax.f32 %v225, 0.0
    %v298 = vmax.f32 %v228, 0.0
    %v299 = vmax.f32 %v230, 0.0
    %v300 = vmax.f32 %v233, 0.0
    %v301 = vmax.f32 %v235, 0.0
    %v302 = vmax.f32 %v238, 0.0
    %v303 = vmax.f32 %v240, 0.0
    %v304 = vmax.f32 %v243, 0.0
    %v305 = vmax.f32 %v245, 0.0
    %v306 = vmax.f32 %v248, 0.0
    %v307 = vmax.f32 %v250, 0.0
    %v308 = vmax.f32 %v253, 0.0
    %v309 = vmax.f32 %v255, 0.0
    %v310 = vmax.f32 %v258, 0.0
    %v311 = vmax.f32 %v260, 0.0
    %v312 = vmax.f32 %v263, 0.0
    %v313 = vmax.f32 %v265, 0.0
    %v314 = vmax.f32 %v268, 0.0
    %v315 = vmax.f32 %v270, 0.0
    %v316 = vmax.f32 %v273, 0.0
    %v317 = vmax.f32 %v275, 0.0
    %v318 = vmax.f32 %v278, 0.0
    %v319 = vmax.f32 %v280, 0.0
    %v320 = vmax.f32 %v283, 0.0
    %v321 = vmax.f32 %v285, 0.0
    %v322 = vmax.f32 %v288, 0.0
    %v323 = vmax.f32 %v290, 0.0
    %v324 = vpack.c.bf16 %v293, %v292
    %v325 = vpack.c.bf16 %v295, %v294
    %v326 = vpack.c.bf16 %v297, %v296
    %v327 = vpack.c.bf16 %v299, %v298
    %v328 = vpack.c.bf16 %v301, %v300
    %v329 = vpack.c.bf16 %v303, %v302
    %v330 = vpack.c.bf16 %v305, %v304
    %v331 = vpack.c.bf16 %v307, %v306
    %v332 = vpack.c.bf16 %v309, %v308
    %v333 = vpack.c.bf16 %v311, %v310
    %v334 = vpack.c.bf16 %v313, %v312
    %v335 = vpack.c.bf16 %v315, %v314
    %v336 = vpack.c.bf16 %v317, %v316
    %v337 = vpack.c.bf16 %v319, %v318
    %v338 = vpack.c.bf16 %v321, %v320
    %v339 = vpack.c.bf16 %v323, %v322
    %v340 = vld [vmem:[%s3] sm:$0xf]
    %v341 = vld [vmem:[%s3 + $0x4] sm:$0xf]
    %v342 = vld [vmem:[%s3 + $0x8] sm:$0xf]
    %v343 = vld [vmem:[%s3 + $0xc] sm:$0xf]
    %v344 = vld [vmem:[%s3 + $0x10] sm:$0xf]
    %v345 = vld [vmem:[%s3 + $0x14] sm:$0xf]
    %v346 = vld [vmem:[%s3 + $0x18] sm:$0xf]
    %v347 = vld [vmem:[%s3 + $0x1c] sm:$0xf]
    %v348 = vld [vmem:[%s3 + $0x20] sm:$0xf]
    %v349 = vld [vmem:[%s3 + $0x24] sm:$0xf]
    %v350 = vld [vmem:[%s3 + $0x28] sm:$0xf]
    %v351 = vld [vmem:[%s3 + $0x2c] sm:$0xf]
    %v352 = vld [vmem:[%s3 + $0x30] sm:$0xf]
    %v353 = vld [vmem:[%s3 + $0x34] sm:$0xf]
    %v354 = vld [vmem:[%s3 + $0x38] sm:$0xf]
    %v355 = vld [vmem:[%s3 + $0x3c] sm:$0xf]
    %v356 = vld [vmem:[%s4] sm:$0x1]
    %v358 = vperm.slane %v356, 0
    %v376 = vunpack.c.l.b16 %v340
    %v377 = vunpack.c.l.b16 %v341
    %v378 = vunpack.c.l.b16 %v342
    %v379 = vunpack.c.l.b16 %v343
    %v380 = vunpack.c.l.b16 %v344
    %v381 = vunpack.c.l.b16 %v345
    %v382 = vunpack.c.l.b16 %v346
    %v383 = vunpack.c.l.b16 %v347
    %v384 = vunpack.c.l.b16 %v348
    %v385 = vunpack.c.l.b16 %v349
    %v386 = vunpack.c.l.b16 %v350
    %v387 = vunpack.c.l.b16 %v351
    %v388 = vunpack.c.l.b16 %v352
    %v389 = vunpack.c.l.b16 %v353
    %v390 = vunpack.c.l.b16 %v354
    %v391 = vunpack.c.l.b16 %v355
    %v392 = vpack.c.b16 %v377, %v376
    %v393 = vpack.c.b16 %v379, %v378
    %v394 = vpack.c.b16 %v381, %v380
    %v395 = vpack.c.b16 %v383, %v382
    %v396 = vpack.c.b16 %v385, %v384
    %v397 = vpack.c.b16 %v387, %v386
    %v398 = vpack.c.b16 %v389, %v388
    %v399 = vpack.c.b16 %v391, %v390
    %408 = vmatpush.bf16.msra.mxu0 %v399
    %409 = vmatpush.bf16.msra.mxu0 %v398
    %410 = vmatpush.bf16.msra.mxu0 %v397
    %411 = vmatpush.bf16.msra.mxu0 %v396
    %412 = vmatpush.bf16.msra.mxu0 %v395
    %413 = vmatpush.bf16.msra.mxu0 %v394
    %414 = vmatpush.bf16.msra.mxu0 %v393
    %415 = vmatpush.bf16.msra.mxu0 %v392
    %416 = vmatmul.bf16.gmra.mxu0 %v324
    %v417 = vpop.f32.mrf.mxu0
    %v418 = vadd.f32 %v358, %v417
    %v419 = vpop.f32.mrf.mxu0
    %v420 = vadd.f32 %v358, %v419
    %421 = vmatmul.bf16.gmra.mxu0 %v325
    %v422 = vpop.f32.mrf.mxu0
    %v423 = vadd.f32 %v358, %v422
    %v424 = vpop.f32.mrf.mxu0
    %v425 = vadd.f32 %v358, %v424
    %426 = vmatmul.bf16.gmra.mxu0 %v326
    %v427 = vpop.f32.mrf.mxu0
    %v428 = vadd.f32 %v358, %v427
    %v429 = vpop.f32.mrf.mxu0
    %v430 = vadd.f32 %v358, %v429
    %431 = vmatmul.bf16.gmra.mxu0 %v327
    %v432 = vpop.f32.mrf.mxu0
    %v433 = vadd.f32 %v358, %v432
    %v434 = vpop.f32.mrf.mxu0
    %v435 = vadd.f32 %v358, %v434
    %436 = vmatmul.bf16.gmra.mxu0 %v328
    %v437 = vpop.f32.mrf.mxu0
    %v438 = vadd.f32 %v358, %v437
    %v439 = vpop.f32.mrf.mxu0
    %v440 = vadd.f32 %v358, %v439
    %441 = vmatmul.bf16.gmra.mxu0 %v329
    %v442 = vpop.f32.mrf.mxu0
    %v443 = vadd.f32 %v358, %v442
    %v444 = vpop.f32.mrf.mxu0
    %v445 = vadd.f32 %v358, %v444
    %446 = vmatmul.bf16.gmra.mxu0 %v330
    %v447 = vpop.f32.mrf.mxu0
    %v448 = vadd.f32 %v358, %v447
    %v449 = vpop.f32.mrf.mxu0
    %v450 = vadd.f32 %v358, %v449
    %451 = vmatmul.bf16.gmra.mxu0 %v331
    %v452 = vpop.f32.mrf.mxu0
    %v453 = vadd.f32 %v358, %v452
    %v454 = vpop.f32.mrf.mxu0
    %v455 = vadd.f32 %v358, %v454
    %456 = vmatmul.bf16.gmra.mxu0 %v332
    %v457 = vpop.f32.mrf.mxu0
    %v458 = vadd.f32 %v358, %v457
    %v459 = vpop.f32.mrf.mxu0
    %v460 = vadd.f32 %v358, %v459
    %461 = vmatmul.bf16.gmra.mxu0 %v333
    %v462 = vpop.f32.mrf.mxu0
    %v463 = vadd.f32 %v358, %v462
    %v464 = vpop.f32.mrf.mxu0
    %v465 = vadd.f32 %v358, %v464
    %466 = vmatmul.bf16.gmra.mxu0 %v334
    %v467 = vpop.f32.mrf.mxu0
    %v468 = vadd.f32 %v358, %v467
    %v469 = vpop.f32.mrf.mxu0
    %v470 = vadd.f32 %v358, %v469
    %471 = vmatmul.bf16.gmra.mxu0 %v335
    %v472 = vpop.f32.mrf.mxu0
    %v473 = vadd.f32 %v358, %v472
    %v474 = vpop.f32.mrf.mxu0
    %v475 = vadd.f32 %v358, %v474
    %476 = vmatmul.bf16.gmra.mxu0 %v336
    %v477 = vpop.f32.mrf.mxu0
    %v478 = vadd.f32 %v358, %v477
    %v479 = vpop.f32.mrf.mxu0
    %v480 = vadd.f32 %v358, %v479
    %481 = vmatmul.bf16.gmra.mxu0 %v337
    %v482 = vpop.f32.mrf.mxu0
    %v483 = vadd.f32 %v358, %v482
    %v484 = vpop.f32.mrf.mxu0
    %v485 = vadd.f32 %v358, %v484
    %486 = vmatmul.bf16.gmra.mxu0 %v338
    %v487 = vpop.f32.mrf.mxu0
    %v488 = vadd.f32 %v358, %v487
    %v489 = vpop.f32.mrf.mxu0
    %v490 = vadd.f32 %v358, %v489
    %491 = vmatmul.bf16.gmra.mxu0 %v339
    %v492 = vpop.f32.mrf.mxu0
    %v493 = vadd.f32 %v358, %v492
    %v494 = vpop.f32.mrf.mxu0
    %v495 = vadd.f32 %v358, %v494
    %496 = vdwg.mxu0
    %497 = vmax.xlane.f32.xlu0 %v418
    %v498 = vpop.xlane.xlu0 %497
    %499 = vmax.xlane.f32.xlu0 %v420
    %v500 = vpop.xlane.xlu0 %499
    %501 = vmax.xlane.f32.xlu0 %v423
    %v502 = vpop.xlane.xlu0 %501
    %503 = vmax.xlane.f32.xlu0 %v425
    %v504 = vpop.xlane.xlu0 %503
    %505 = vmax.xlane.f32.xlu0 %v428
    %v506 = vpop.xlane.xlu0 %505
    %507 = vmax.xlane.f32.xlu0 %v430
    %v508 = vpop.xlane.xlu0 %507
    %509 = vmax.xlane.f32.xlu0 %v433
    %v510 = vpop.xlane.xlu0 %509
    %511 = vmax.xlane.f32.xlu0 %v435
    %v512 = vpop.xlane.xlu0 %511
    %513 = vmax.xlane.f32.xlu0 %v438
    %v514 = vpop.xlane.xlu0 %513
    %515 = vmax.xlane.f32.xlu0 %v440
    %v516 = vpop.xlane.xlu0 %515
    %517 = vmax.xlane.f32.xlu0 %v443
    %v518 = vpop.xlane.xlu0 %517
    %519 = vmax.xlane.f32.xlu0 %v445
    %v520 = vpop.xlane.xlu0 %519
    %521 = vmax.xlane.f32.xlu0 %v448
    %v522 = vpop.xlane.xlu0 %521
    %523 = vmax.xlane.f32.xlu0 %v450
    %v524 = vpop.xlane.xlu0 %523
    %525 = vmax.xlane.f32.xlu0 %v453
    %v526 = vpop.xlane.xlu0 %525
    %527 = vmax.xlane.f32.xlu0 %v455
    %v528 = vpop.xlane.xlu0 %527
    %529 = vmax.xlane.f32.xlu0 %v458
    %v530 = vpop.xlane.xlu0 %529
    %531 = vmax.xlane.f32.xlu0 %v460
    %v532 = vpop.xlane.xlu0 %531
    %533 = vmax.xlane.f32.xlu0 %v463
    %v534 = vpop.xlane.xlu0 %533
    %535 = vmax.xlane.f32.xlu0 %v465
    %v536 = vpop.xlane.xlu0 %535
    %537 = vmax.xlane.f32.xlu0 %v468
    %v538 = vpop.xlane.xlu0 %537
    %539 = vmax.xlane.f32.xlu0 %v470
    %v540 = vpop.xlane.xlu0 %539
    %541 = vmax.xlane.f32.xlu0 %v473
    %v542 = vpop.xlane.xlu0 %541
    %543 = vmax.xlane.f32.xlu0 %v475
    %v544 = vpop.xlane.xlu0 %543
    %545 = vmax.xlane.f32.xlu0 %v478
    %v546 = vpop.xlane.xlu0 %545
    %547 = vmax.xlane.f32.xlu0 %v480
    %v548 = vpop.xlane.xlu0 %547
    %549 = vmax.xlane.f32.xlu0 %v483
    %v550 = vpop.xlane.xlu0 %549
    %551 = vmax.xlane.f32.xlu0 %v485
    %v552 = vpop.xlane.xlu0 %551
    %553 = vmax.xlane.f32.xlu0 %v488
    %v554 = vpop.xlane.xlu0 %553
    %555 = vmax.xlane.f32.xlu0 %v490
    %v556 = vpop.xlane.xlu0 %555
    %557 = vmax.xlane.f32.xlu0 %v493
    %v558 = vpop.xlane.xlu0 %557
    %559 = vmax.xlane.f32.xlu0 %v495
    %v560 = vpop.xlane.xlu0 %559
    %v561 = vsub.f32 %v418, %v498
    %v562 = vsub.f32 %v420, %v500
    %v563 = vsub.f32 %v423, %v502
    %v564 = vsub.f32 %v425, %v504
    %v565 = vsub.f32 %v428, %v506
    %v566 = vsub.f32 %v430, %v508
    %v567 = vsub.f32 %v433, %v510
    %v568 = vsub.f32 %v435, %v512
    %v569 = vsub.f32 %v438, %v514
    %v570 = vsub.f32 %v440, %v516
    %v571 = vsub.f32 %v443, %v518
    %v572 = vsub.f32 %v445, %v520
    %v573 = vsub.f32 %v448, %v522
    %v574 = vsub.f32 %v450, %v524
    %v575 = vsub.f32 %v453, %v526
    %v576 = vsub.f32 %v455, %v528
    %v577 = vsub.f32 %v458, %v530
    %v578 = vsub.f32 %v460, %v532
    %v579 = vsub.f32 %v463, %v534
    %v580 = vsub.f32 %v465, %v536
    %v581 = vsub.f32 %v468, %v538
    %v582 = vsub.f32 %v470, %v540
    %v583 = vsub.f32 %v473, %v542
    %v584 = vsub.f32 %v475, %v544
    %v585 = vsub.f32 %v478, %v546
    %v586 = vsub.f32 %v480, %v548
    %v587 = vsub.f32 %v483, %v550
    %v588 = vsub.f32 %v485, %v552
    %v589 = vsub.f32 %v488, %v554
    %v590 = vsub.f32 %v490, %v556
    %v591 = vsub.f32 %v493, %v558
    %v592 = vsub.f32 %v495, %v560
    %v593 = vmul.f32 %v561, 1.442695
    %v594 = vpow.pop %v593
    %v595 = vmul.f32 %v562, 1.442695
    %v596 = vpow.pop %v595
    %v597 = vmul.f32 %v563, 1.442695
    %v598 = vpow.pop %v597
    %v599 = vmul.f32 %v564, 1.442695
    %v600 = vpow.pop %v599
    %v601 = vmul.f32 %v565, 1.442695
    %v602 = vpow.pop %v601
    %v603 = vmul.f32 %v566, 1.442695
    %v604 = vpow.pop %v603
    %v605 = vmul.f32 %v567, 1.442695
    %v606 = vpow.pop %v605
    %v607 = vmul.f32 %v568, 1.442695
    %v608 = vpow.pop %v607
    %v609 = vmul.f32 %v569, 1.442695
    %v610 = vpow.pop %v609
    %v611 = vmul.f32 %v570, 1.442695
    %v612 = vpow.pop %v611
    %v613 = vmul.f32 %v571, 1.442695
    %v614 = vpow.pop %v613
    %v615 = vmul.f32 %v572, 1.442695
    %v616 = vpow.pop %v615
    %v617 = vmul.f32 %v573, 1.442695
    %v618 = vpow.pop %v617
    %v619 = vmul.f32 %v574, 1.442695
    %v620 = vpow.pop %v619
    %v621 = vmul.f32 %v575, 1.442695
    %v622 = vpow.pop %v621
    %v623 = vmul.f32 %v576, 1.442695
    %v624 = vpow.pop %v623
    %v625 = vmul.f32 %v577, 1.442695
    %v626 = vpow.pop %v625
    %v627 = vmul.f32 %v578, 1.442695
    %v628 = vpow.pop %v627
    %v629 = vmul.f32 %v579, 1.442695
    %v630 = vpow.pop %v629
    %v631 = vmul.f32 %v580, 1.442695
    %v632 = vpow.pop %v631
    %v633 = vmul.f32 %v581, 1.442695
    %v634 = vpow.pop %v633
    %v635 = vmul.f32 %v582, 1.442695
    %v636 = vpow.pop %v635
    %v637 = vmul.f32 %v583, 1.442695
    %v638 = vpow.pop %v637
    %v639 = vmul.f32 %v584, 1.442695
    %v640 = vpow.pop %v639
    %v641 = vmul.f32 %v585, 1.442695
    %v642 = vpow.pop %v641
    %v643 = vmul.f32 %v586, 1.442695
    %v644 = vpow.pop %v643
    %v645 = vmul.f32 %v587, 1.442695
    %v646 = vpow.pop %v645
    %v647 = vmul.f32 %v588, 1.442695
    %v648 = vpow.pop %v647
    %v649 = vmul.f32 %v589, 1.442695
    %v650 = vpow.pop %v649
    %v651 = vmul.f32 %v590, 1.442695
    %v652 = vpow.pop %v651
    %v653 = vmul.f32 %v591, 1.442695
    %v654 = vpow.pop %v653
    %v655 = vmul.f32 %v592, 1.442695
    %v656 = vpow.pop %v655
    %657 = vadd.xlane.f32.xlu0 %v594
    %v658 = vpop.xlane.xlu0 %657
    %659 = vadd.xlane.f32.xlu0 %v596
    %v660 = vpop.xlane.xlu0 %659
    %661 = vadd.xlane.f32.xlu0 %v598
    %v662 = vpop.xlane.xlu0 %661
    %663 = vadd.xlane.f32.xlu0 %v600
    %v664 = vpop.xlane.xlu0 %663
    %665 = vadd.xlane.f32.xlu0 %v602
    %v666 = vpop.xlane.xlu0 %665
    %667 = vadd.xlane.f32.xlu0 %v604
    %v668 = vpop.xlane.xlu0 %667
    %669 = vadd.xlane.f32.xlu0 %v606
    %v670 = vpop.xlane.xlu0 %669
    %671 = vadd.xlane.f32.xlu0 %v608
    %v672 = vpop.xlane.xlu0 %671
    %673 = vadd.xlane.f32.xlu0 %v610
    %v674 = vpop.xlane.xlu0 %673
    %675 = vadd.xlane.f32.xlu0 %v612
    %v676 = vpop.xlane.xlu0 %675
    %677 = vadd.xlane.f32.xlu0 %v614
    %v678 = vpop.xlane.xlu0 %677
    %679 = vadd.xlane.f32.xlu0 %v616
    %v680 = vpop.xlane.xlu0 %679
    %681 = vadd.xlane.f32.xlu0 %v618
    %v682 = vpop.xlane.xlu0 %681
    %683 = vadd.xlane.f32.xlu0 %v620
    %v684 = vpop.xlane.xlu0 %683
    %685 = vadd.xlane.f32.xlu0 %v622
    %v686 = vpop.xlane.xlu0 %685
    %687 = vadd.xlane.f32.xlu0 %v624
    %v688 = vpop.xlane.xlu0 %687
    %689 = vadd.xlane.f32.xlu0 %v626
    %v690 = vpop.xlane.xlu0 %689
    %691 = vadd.xlane.f32.xlu0 %v628
    %v692 = vpop.xlane.xlu0 %691
    %693 = vadd.xlane.f32.xlu0 %v630
    %v694 = vpop.xlane.xlu0 %693
    %695 = vadd.xlane.f32.xlu0 %v632
    %v696 = vpop.xlane.xlu0 %695
    %697 = vadd.xlane.f32.xlu0 %v634
    %v698 = vpop.xlane.xlu0 %697
    %699 = vadd.xlane.f32.xlu0 %v636
    %v700 = vpop.xlane.xlu0 %699
    %701 = vadd.xlane.f32.xlu0 %v638
    %v702 = vpop.xlane.xlu0 %701
    %703 = vadd.xlane.f32.xlu0 %v640
    %v704 = vpop.xlane.xlu0 %703
    %705 = vadd.xlane.f32.xlu0 %v642
    %v706 = vpop.xlane.xlu0 %705
    %707 = vadd.xlane.f32.xlu0 %v644
    %v708 = vpop.xlane.xlu0 %707
    %709 = vadd.xlane.f32.xlu0 %v646
    %v710 = vpop.xlane.xlu0 %709
    %711 = vadd.xlane.f32.xlu0 %v648
    %v712 = vpop.xlane.xlu0 %711
    %713 = vadd.xlane.f32.xlu0 %v650
    %v714 = vpop.xlane.xlu0 %713
    %715 = vadd.xlane.f32.xlu0 %v652
    %v716 = vpop.xlane.xlu0 %715
    %717 = vadd.xlane.f32.xlu0 %v654
    %v718 = vpop.xlane.xlu0 %717
    %719 = vadd.xlane.f32.xlu0 %v656
    %v720 = vpop.xlane.xlu0 %719
    %v721 = vrcp.pop %v658
    %v722 = vrcp.pop %v660
    %v723 = vrcp.pop %v662
    %v724 = vrcp.pop %v664
    %v725 = vrcp.pop %v666
    %v726 = vrcp.pop %v668
    %v727 = vrcp.pop %v670
    %v728 = vrcp.pop %v672
    %v729 = vrcp.pop %v674
    %v730 = vrcp.pop %v676
    %v731 = vrcp.pop %v678
    %v732 = vrcp.pop %v680
    %v733 = vrcp.pop %v682
    %v734 = vrcp.pop %v684
    %v735 = vrcp.pop %v686
    %v736 = vrcp.pop %v688
    %v737 = vrcp.pop %v690
    %v738 = vrcp.pop %v692
    %v739 = vrcp.pop %v694
    %v740 = vrcp.pop %v696
    %v741 = vrcp.pop %v698
    %v742 = vrcp.pop %v700
    %v743 = vrcp.pop %v702
    %v744 = vrcp.pop %v704
    %v745 = vrcp.pop %v706
    %v746 = vrcp.pop %v708
    %v747 = vrcp.pop %v710
    %v748 = vrcp.pop %v712
    %v749 = vrcp.pop %v714
    %v750 = vrcp.pop %v716
    %v751 = vrcp.pop %v718
    %v752 = vrcp.pop %v720
    %v753 = vmul.f32 %v658, %v721
    %v754 = vmul.f32 %v660, %v722
    %v755 = vmul.f32 %v662, %v723
    %v756 = vmul.f32 %v664, %v724
    %v757 = vmul.f32 %v666, %v725
    %v758 = vmul.f32 %v668, %v726
    %v759 = vmul.f32 %v670, %v727
    %v760 = vmul.f32 %v672, %v728
    %v761 = vmul.f32 %v674, %v729
    %v762 = vmul.f32 %v676, %v730
    %v763 = vmul.f32 %v678, %v731
    %v764 = vmul.f32 %v680, %v732
    %v765 = vmul.f32 %v682, %v733
    %v766 = vmul.f32 %v684, %v734
    %v767 = vmul.f32 %v686, %v735
    %v768 = vmul.f32 %v688, %v736
    %v769 = vmul.f32 %v690, %v737
    %v770 = vmul.f32 %v692, %v738
    %v771 = vmul.f32 %v694, %v739
    %v772 = vmul.f32 %v696, %v740
    %v773 = vmul.f32 %v698, %v741
    %v774 = vmul.f32 %v700, %v742
    %v775 = vmul.f32 %v702, %v743
    %v776 = vmul.f32 %v704, %v744
    %v777 = vmul.f32 %v706, %v745
    %v778 = vmul.f32 %v708, %v746
    %v779 = vmul.f32 %v710, %v747
    %v780 = vmul.f32 %v712, %v748
    %v781 = vmul.f32 %v714, %v749
    %v782 = vmul.f32 %v716, %v750
    %v783 = vmul.f32 %v718, %v751
    %v784 = vmul.f32 %v720, %v752
    %v785 = vsub.f32 2.0, %v753
    %v786 = vsub.f32 2.0, %v754
    %v787 = vsub.f32 2.0, %v755
    %v788 = vsub.f32 2.0, %v756
    %v789 = vsub.f32 2.0, %v757
    %v790 = vsub.f32 2.0, %v758
    %v791 = vsub.f32 2.0, %v759
    %v792 = vsub.f32 2.0, %v760
    %v793 = vsub.f32 2.0, %v761
    %v794 = vsub.f32 2.0, %v762
    %v795 = vsub.f32 2.0, %v763
    %v796 = vsub.f32 2.0, %v764
    %v797 = vsub.f32 2.0, %v765
    %v798 = vsub.f32 2.0, %v766
    %v799 = vsub.f32 2.0, %v767
    %v800 = vsub.f32 2.0, %v768
    %v801 = vsub.f32 2.0, %v769
    %v802 = vsub.f32 2.0, %v770
    %v803 = vsub.f32 2.0, %v771
    %v804 = vsub.f32 2.0, %v772
    %v805 = vsub.f32 2.0, %v773
    %v806 = vsub.f32 2.0, %v774
    %v807 = vsub.f32 2.0, %v775
    %v808 = vsub.f32 2.0, %v776
    %v809 = vsub.f32 2.0, %v777
    %v810 = vsub.f32 2.0, %v778
    %v811 = vsub.f32 2.0, %v779
    %v812 = vsub.f32 2.0, %v780
    %v813 = vsub.f32 2.0, %v781
    %v814 = vsub.f32 2.0, %v782
    %v815 = vsub.f32 2.0, %v783
    %v816 = vsub.f32 2.0, %v784
    %v817 = vmul.f32 %v721, %v785
    %v818 = vmul.f32 %v722, %v786
    %v819 = vmul.f32 %v723, %v787
    %v820 = vmul.f32 %v724, %v788
    %v821 = vmul.f32 %v725, %v789
    %v822 = vmul.f32 %v726, %v790
    %v823 = vmul.f32 %v727, %v791
    %v824 = vmul.f32 %v728, %v792
    %v825 = vmul.f32 %v729, %v793
    %v826 = vmul.f32 %v730, %v794
    %v827 = vmul.f32 %v731, %v795
    %v828 = vmul.f32 %v732, %v796
    %v829 = vmul.f32 %v733, %v797
    %v830 = vmul.f32 %v734, %v798
    %v831 = vmul.f32 %v735, %v799
    %v832 = vmul.f32 %v736, %v800
    %v833 = vmul.f32 %v737, %v801
    %v834 = vmul.f32 %v738, %v802
    %v835 = vmul.f32 %v739, %v803
    %v836 = vmul.f32 %v740, %v804
    %v837 = vmul.f32 %v741, %v805
    %v838 = vmul.f32 %v742, %v806
    %v839 = vmul.f32 %v743, %v807
    %v840 = vmul.f32 %v744, %v808
    %v841 = vmul.f32 %v745, %v809
    %v842 = vmul.f32 %v746, %v810
    %v843 = vmul.f32 %v747, %v811
    %v844 = vmul.f32 %v748, %v812
    %v845 = vmul.f32 %v749, %v813
    %v846 = vmul.f32 %v750, %v814
    %v847 = vmul.f32 %v751, %v815
    %v848 = vmul.f32 %v752, %v816
    %v849 = vmul.f32 %v594, %v817
    %v850 = vmul.f32 %v596, %v818
    %v851 = vmul.f32 %v598, %v819
    %v852 = vmul.f32 %v600, %v820
    %v853 = vmul.f32 %v602, %v821
    %v854 = vmul.f32 %v604, %v822
    %v855 = vmul.f32 %v606, %v823
    %v856 = vmul.f32 %v608, %v824
    %v857 = vmul.f32 %v610, %v825
    %v858 = vmul.f32 %v612, %v826
    %v859 = vmul.f32 %v614, %v827
    %v860 = vmul.f32 %v616, %v828
    %v861 = vmul.f32 %v618, %v829
    %v862 = vmul.f32 %v620, %v830
    %v863 = vmul.f32 %v622, %v831
    %v864 = vmul.f32 %v624, %v832
    %v865 = vmul.f32 %v626, %v833
    %v866 = vmul.f32 %v628, %v834
    %v867 = vmul.f32 %v630, %v835
    %v868 = vmul.f32 %v632, %v836
    %v869 = vmul.f32 %v634, %v837
    %v870 = vmul.f32 %v636, %v838
    %v871 = vmul.f32 %v638, %v839
    %v872 = vmul.f32 %v640, %v840
    %v873 = vmul.f32 %v642, %v841
    %v874 = vmul.f32 %v644, %v842
    %v875 = vmul.f32 %v646, %v843
    %v876 = vmul.f32 %v648, %v844
    %v877 = vmul.f32 %v650, %v845
    %v878 = vmul.f32 %v652, %v846
    %v879 = vmul.f32 %v654, %v847
    %v880 = vmul.f32 %v656, %v848
    %881 = vst [vmem:[#allocation2] sm:$0xff] %v849
    %882 = vst [vmem:[#allocation2 + $0x8] sm:$0xff] %v850
    %883 = vst [vmem:[#allocation2 + $0x10] sm:$0xff] %v851
    %884 = vst [vmem:[#allocation2 + $0x18] sm:$0xff] %v852
    %885 = vst [vmem:[#allocation2 + $0x20] sm:$0xff] %v853
    %886 = vst [vmem:[#allocation2 + $0x28] sm:$0xff] %v854
    %887 = vst [vmem:[#allocation2 + $0x30] sm:$0xff] %v855
    %888 = vst [vmem:[#allocation2 + $0x38] sm:$0xff] %v856
    %889 = vst [vmem:[#allocation2 + $0x40] sm:$0xff] %v857
    %890 = vst [vmem:[#allocation2 + $0x48] sm:$0xff] %v858
    %891 = vst [vmem:[#allocation2 + $0x50] sm:$0xff] %v859
    %892 = vst [vmem:[#allocation2 + $0x58] sm:$0xff] %v860
    %893 = vst [vmem:[#allocation2 + $0x60] sm:$0xff] %v861
    %894 = vst [vmem:[#allocation2 + $0x68] sm:$0xff] %v862
    %895 = vst [vmem:[#allocation2 + $0x70] sm:$0xff] %v863
    %896 = vst [vmem:[#allocation2 + $0x78] sm:$0xff] %v864
    %897 = vst [vmem:[#allocation2 + $0x80] sm:$0xff] %v865
    %898 = vst [vmem:[#allocation2 + $0x88] sm:$0xff] %v866
    %899 = vst [vmem:[#allocation2 + $0x90] sm:$0xff] %v867
    %900 = vst [vmem:[#allocation2 + $0x98] sm:$0xff] %v868
    %901 = vst [vmem:[#allocation2 + $0xa0] sm:$0xff] %v869
    %902 = vst [vmem:[#allocation2 + $0xa8] sm:$0xff] %v870
    %903 = vst [vmem:[#allocation2 + $0xb0] sm:$0xff] %v871
    %904 = vst [vmem:[#allocation2 + $0xb8] sm:$0xff] %v872
    %905 = vst [vmem:[#allocation2 + $0xc0] sm:$0xff] %v873
    %906 = vst [vmem:[#allocation2 + $0xc8] sm:$0xff] %v874
    %907 = vst [vmem:[#allocation2 + $0xd0] sm:$0xff] %v875
    %908 = vst [vmem:[#allocation2 + $0xd8] sm:$0xff] %v876
    %909 = vst [vmem:[#allocation2 + $0xe0] sm:$0xff] %v877
    %910 = vst [vmem:[#allocation2 + $0xe8] sm:$0xff] %v878
    %911 = vst [vmem:[#allocation2 + $0xf0] sm:$0xff] %v879
    %912 = vst [vmem:[#allocation2 + $0xf8] sm:$0xff] %v880
    // Predicated region
    $region22: #{tpu_custom_call.1} parent=1 // pred_check
      _
    $region23: #{tpu_custom_call.1} parent=1 // pred_check_branch
      %914 = sbr.rel (0) target = $region25
    $region24: #{tpu_custom_call.1} parent=1 // pred_region
      %916 = vsyncadd [#allocation3], 0
      %s917 = sshll.u32 [#allocation2], 4
      %s918 = int_to_ptr.vmem [resolvable:$true] %s917
      %s919 = sshll.u32 %s5, 4
      %s920 = int_to_ptr.hbm [resolvable:$true] %s919
      %925 = dma.vmem_to_hbm [thread:$0]  %s918, 4096, %s920, [#allocation3], 128, 128, 8
    $region25: #{tpu_custom_call.1} parent=1 // pred_fallthru
      _
    // Predicated region
    $region26: #{tpu_custom_call.1} parent=1 // pred_check
      _
    $region27: #{tpu_custom_call.1} parent=1 // pred_check_branch
      %927 = sbr.rel (0) target = $region29
    $region28: #{tpu_custom_call.1} parent=1 // pred_region
      %929 = dma.done [#allocation3], 4096
    $region29: #{tpu_custom_call.1} parent=1 // pred_fallthru
      _
    %930 = vsyncpa [#allocation3], 1

</llo_original>
